<compile_context>
chip_gen: v7x
topology: tpu7x:2x2x1
jax: 0.10.0
libtpu: 0.0.40
codegen_flags: <defaults>
</compile_context>

<pallas_src>
import math

import jax
import jax.numpy as jnp
from jax.experimental import pallas as pl
from jax.experimental.pallas import tpu as pltpu

IN_FEATURES = 784
OUT_FEATURES = 10
DEFAULT_TILE_B = 1024


def _round_up(x, m):
    return (x + m - 1) // m * m


def _pick_tile_b(B, tile_b):
    """Multiple-of-8 batch tile; split moderate batches so grid >= 2 steps."""
    if B <= 8:
        return B  # block dim equals full array dim -> allowed
    tile_b = _round_up(min(tile_b, B), 8)
    if tile_b >= B and B >= 256:
        # Single-step grid can't megacore-shard on v7x; split into 2 steps.
        tile_b = _round_up(pl.cdiv(B, 2), 8)
    return tile_b


def linear_kernel(x_ref, w_ref, b_ref, o_ref):
    # x_ref: (tile_b, 784)  x's own HBM dtype (cast in-VMEM, no extra HBM pass)
    # w_ref: (784, 10)      param dtype, pre-transposed (MXU consumes directly)
    # b_ref: (1, 10)        f32 (epilogue stays f32 -- v5e has no bf16 VPU)
    # o_ref: (tile_b, 10)   f32
    x = x_ref[...].astype(w_ref.dtype)
    y = jnp.dot(x, w_ref[...], preferred_element_type=jnp.float32)
    o_ref[...] = (y + b_ref[...]).astype(o_ref.dtype)


def prepare_params(weight, bias, *, param_dtype=jnp.float32):
    """One-time re-layout of PyTorch-style params. Keep the result around.

    weight: (10, 784)  ->  w_t: (784, 10) in param_dtype
    bias:   (10,)      ->  b2:  (1, 10)   f32
    """
    w_t = jnp.asarray(weight).T.astype(param_dtype)
    b2 = jnp.asarray(bias, dtype=jnp.float32).reshape(1, -1)
    return w_t, b2


def mnist_logistic_forward(x, w_t, b2, *, tile_b=DEFAULT_TILE_B):
    """x: (B, 784), w_t: (784, 10) pre-laid-out, b2: (1, 10) -> (B, 10) f32."""
    B, D = x.shape
    Dw, O = w_t.shape
    assert D == Dw, (D, Dw)

    tb = _pick_tile_b(B, tile_b)
    grid = (pl.cdiv(B, tb),)

    return pl.pallas_call(
        linear_kernel,
        out_shape=jax.ShapeDtypeStruct((B, O), jnp.float32),
        grid_spec=pltpu.PrefetchScalarGridSpec(
            num_scalar_prefetch=0,
            grid=grid,
            in_specs=[
                pl.BlockSpec((tb, D), lambda i: (i, 0)),   # x streams per tile
                pl.BlockSpec((Dw, O), lambda i: (0, 0)),   # weight VMEM-resident
                pl.BlockSpec((1, O), lambda i: (0, 0)),    # bias VMEM-resident
            ],
            out_specs=pl.BlockSpec((tb, O), lambda i: (i, 0)),
        ),
        compiler_params=pltpu.CompilerParams(
            dimension_semantics=("parallel",),  # megacore-shards batch on v7x
        ),
    )(x, w_t, b2)


if __name__ == "__main__":
    key = jax.random.PRNGKey(0)
    kx, kw, kb = jax.random.split(key, 3)

    batch_size = 64  # matches the PyTorch script's batch_size

    x = jax.random.normal(kx, (batch_size, IN_FEATURES), dtype=jnp.float32)
    bound = 1.0 / math.sqrt(IN_FEATURES)
    weight = jax.random.uniform(
        kw, (OUT_FEATURES, IN_FEATURES), minval=-bound, maxval=bound,
        dtype=jnp.float32)
    bias = jax.random.uniform(
        kb, (OUT_FEATURES,), minval=-bound, maxval=bound, dtype=jnp.float32)

    ref = x @ weight.T + bias

    # f32 params (matches PyTorch semantics).
    w_t, b2 = prepare_params(weight, bias)
    out = mnist_logistic_forward(x, w_t, b2)
    jax.block_until_ready(out)
    assert out.shape == (batch_size, OUT_FEATURES)
    assert jnp.allclose(out, ref, atol=1e-4, rtol=1e-4)

    # bf16 parameter storage; x stays f32 in HBM, cast happens in-kernel.
    w_bf, b2f = prepare_params(weight, bias, param_dtype=jnp.bfloat16)
    out_bf = mnist_logistic_forward(x, w_bf, b2f)
    jax.block_until_ready(out_bf)
    assert jnp.allclose(out_bf, ref, atol=5e-2, rtol=5e-2)

    # Ragged batch: multi-step grid with masked boundary block (no jnp.pad).
    x_big = jax.random.normal(kx, (300, IN_FEATURES), dtype=jnp.float32)
    out_big = mnist_logistic_forward(x_big, w_t, b2, tile_b=128)
    jax.block_until_ready(out_big)
    assert out_big.shape == (300, OUT_FEATURES)
    assert jnp.allclose(out_big, x_big @ weight.T + bias, atol=1e-4, rtol=1e-4)

    # Moderate batch: tile auto-splits so the grid has >= 2 steps (v7x megacore).
    x_mid = jax.random.normal(kx, (512, IN_FEATURES), dtype=jnp.float32)
    out_mid = mnist_logistic_forward(x_mid, w_t, b2)
    jax.block_until_ready(out_mid)
    assert out_mid.shape == (512, OUT_FEATURES)
    assert jnp.allclose(out_mid, x_mid @ weight.T + bias, atol=1e-4, rtol=1e-4)

    print("KERNEL_OK")
</pallas_src>

<mosaic_0001>
module attributes {stable_mosaic.version = 11 : i64} {
  func.func @linear_kernel(%arg0: i32, %arg1: memref<64x784xf32, #tpu.memory_space<vmem>>, %arg2: memref<784x10xf32, #tpu.memory_space<vmem>>, %arg3: memref<1x10xf32, #tpu.memory_space<vmem>>, %arg4: memref<64x10xf32, #tpu.memory_space<vmem>>) attributes {dimension_semantics = [#tpu.dimension_semantics<parallel>], iteration_bounds = array<i64: 1>, scalar_prefetch = 0 : i64, scratch_operands = 0 : i64, tpu.core_type = #tpu.core_type<tc>, window_params = [{transform_indices = @transform_0, window_bounds = array<i64: 64, 784>}, {pipeline_mode = #tpu.pipeline_mode<synchronous>, transform_indices = @transform_1, window_bounds = array<i64: 784, 10>}, {pipeline_mode = #tpu.pipeline_mode<synchronous>, transform_indices = @transform_2, window_bounds = array<i64: 1, 10>}, {transform_indices = @transform_3, window_bounds = array<i64: 64, 10>}]} {
    %c0 = arith.constant 0 : index
    %c0_0 = arith.constant 0 : index
    %0 = vector.load %arg1[%c0, %c0_0] : memref<64x784xf32, #tpu.memory_space<vmem>>, vector<64x784xf32>
    %c0_1 = arith.constant 0 : index
    %c0_2 = arith.constant 0 : index
    %1 = vector.load %arg2[%c0_1, %c0_2] : memref<784x10xf32, #tpu.memory_space<vmem>>, vector<784x10xf32>
    %cst = arith.constant dense<0.000000e+00> : vector<64x10xf32>
    %2 = tpu.matmul %0, %1, %cst {dimension_numbers = #tpu.dot_dimension_numbers<[1], [0], [0], [1], [0, 0, 1, 1], [], []>} : vector<64x784xf32>, vector<784x10xf32>, vector<64x10xf32> -> vector<64x10xf32>
    %c0_3 = arith.constant 0 : index
    %c0_4 = arith.constant 0 : index
    %3 = vector.load %arg3[%c0_3, %c0_4] : memref<1x10xf32, #tpu.memory_space<vmem>>, vector<1x10xf32>
    %4 = vector.broadcast %3 : vector<1x10xf32> to vector<64x10xf32>
    %5 = arith.addf %2, %4 : vector<64x10xf32>
    %c0_5 = arith.constant 0 : index
    %c0_6 = arith.constant 0 : index
    %6 = vector.load %arg4[%c0_5, %c0_6] : memref<64x10xf32, #tpu.memory_space<vmem>>, vector<64x10xf32>
    tpu.vector_store %arg4[%c0_5, %c0_6], %5 {strides = array<i32>} : memref<64x10xf32, #tpu.memory_space<vmem>>, vector<64x10xf32>,
    return
  }
  func.func @transform_0(%arg0: i32) -> (i32, i32) {
    %c0_i32 = arith.constant 0 : i32
    %c0_i32_0 = arith.constant 0 : i32
    return %arg0, %c0_i32 : i32, i32
  }
  func.func @transform_1(%arg0: i32) -> (i32, i32) {
    %c0_i32 = arith.constant 0 : i32
    %c0_i32_0 = arith.constant 0 : i32
    %c0_i32_1 = arith.constant 0 : i32
    return %c0_i32, %c0_i32_0 : i32, i32
  }
  func.func @transform_2(%arg0: i32) -> (i32, i32) {
    %c0_i32 = arith.constant 0 : i32
    %c0_i32_0 = arith.constant 0 : i32
    %c0_i32_1 = arith.constant 0 : i32
    return %c0_i32, %c0_i32_0 : i32, i32
  }
  func.func @transform_3(%arg0: i32) -> (i32, i32) {
    %c0_i32 = arith.constant 0 : i32
    %c0_i32_0 = arith.constant 0 : i32
    return %arg0, %c0_i32 : i32, i32
  }
}

</mosaic_0001>

<llo_original>
// kernel: tpu_custom_call.1
$region0: #{tpu_custom_call.1}
  #allocation0 [shape = 'u32[]', space=smem, size = 0x4, offset = 0x4, fixed_abs, tag = 'smem constant byte address 0x4 - core index']
  #allocation1 [shape = 'u32[144,128]{1,0:T(1,128)}', space=vmem, size = 0x12000, scoped, tag = 'internal scratch']
  %s0 = inlined_call_operand.vmem [shape: f32[64,784], index: 0, kind: input, shape index: {}]
  %s1 = inlined_call_operand.vmem [shape: f32[784,10], index: 1, kind: input, shape index: {}]
  %s2 = inlined_call_operand.vmem [shape: f32[1,10], index: 2, kind: input, shape index: {}]
  %s3 = inlined_call_operand.vmem [shape: f32[64,10], index: 3, kind: output, shape index: {}]
  %s4 = sld [smem:[#allocation0]]
  $region22: #{tpu_custom_call.1} parent=0
    _
  %s6 = ssub.s32 1, %s4
  %s7 = scalar_select 0, %s6, %s4
  // Predicated region
  $region2: #{tpu_custom_call.1} parent=0 // pred_check
    _
  $region3: #{tpu_custom_call.1} parent=0 // pred_check_branch
    %9 = sbr.rel (0) target = $region5
  $region4: #{tpu_custom_call.1} parent=0 // pred_region
    _
  $region5: #{tpu_custom_call.1} parent=0 // pred_fallthru
    _
  // Predicated region
  $region6: #{tpu_custom_call.1} parent=0 // pred_check
    _
  $region7: #{tpu_custom_call.1} parent=0 // pred_check_branch
    %11 = sbr.rel (0) target = $region9
  $region8: #{tpu_custom_call.1} parent=0 // pred_region
    _
  $region9: #{tpu_custom_call.1} parent=0 // pred_fallthru
    _
  // Predicated region
  $region10: #{tpu_custom_call.1} parent=0 // pred_check
    _
  $region11: #{tpu_custom_call.1} parent=0 // pred_check_branch
    %13 = sbr.rel (0) target = $region13
  $region12: #{tpu_custom_call.1} parent=0 // pred_region
    _
  $region13: #{tpu_custom_call.1} parent=0 // pred_fallthru
    _
  %v14 = vld [vmem:[%s0] sm:$0xff]
  %v15 = vld [vmem:[%s0 + $0x8] sm:$0xff]
  %v16 = vld [vmem:[%s0 + $0x10] sm:$0xff]
  %v17 = vld [vmem:[%s0 + $0x18] sm:$0xff]
  %v18 = vld [vmem:[%s0 + $0x20] sm:$0xff]
  %v19 = vld [vmem:[%s0 + $0x28] sm:$0xff]
  %v20 = vld [vmem:[%s0 + $0x30] sm:$0xff]
  %v21 = vld [vmem:[%s0 + $0x38] sm:$0xff]
  %v22 = vld [vmem:[%s0 + $0x40] sm:$0xff]
  %v23 = vld [vmem:[%s0 + $0x48] sm:$0xff]
  %v24 = vld [vmem:[%s0 + $0x50] sm:$0xff]
  %v25 = vld [vmem:[%s0 + $0x58] sm:$0xff]
  %v26 = vld [vmem:[%s0 + $0x60] sm:$0xff]
  %v27 = vld [vmem:[%s0 + $0x68] sm:$0xff]
  %v28 = vld [vmem:[%s0 + $0x70] sm:$0xff]
  %v29 = vld [vmem:[%s0 + $0x78] sm:$0xff]
  %v30 = vld [vmem:[%s0 + $0x80] sm:$0xff]
  %v31 = vld [vmem:[%s0 + $0x88] sm:$0xff]
  %v32 = vld [vmem:[%s0 + $0x90] sm:$0xff]
  %v33 = vld [vmem:[%s0 + $0x98] sm:$0xff]
  %v34 = vld [vmem:[%s0 + $0xa0] sm:$0xff]
  %v35 = vld [vmem:[%s0 + $0xa8] sm:$0xff]
  %v36 = vld [vmem:[%s0 + $0xb0] sm:$0xff]
  %v37 = vld [vmem:[%s0 + $0xb8] sm:$0xff]
  %v38 = vld [vmem:[%s0 + $0xc0] sm:$0xff]
  %v39 = vld [vmem:[%s0 + $0xc8] sm:$0xff]
  %v40 = vld [vmem:[%s0 + $0xd0] sm:$0xff]
  %v41 = vld [vmem:[%s0 + $0xd8] sm:$0xff]
  %v42 = vld [vmem:[%s0 + $0xe0] sm:$0xff]
  %v43 = vld [vmem:[%s0 + $0xe8] sm:$0xff]
  %v44 = vld [vmem:[%s0 + $0xf0] sm:$0xff]
  %v45 = vld [vmem:[%s0 + $0xf8] sm:$0xff]
  %v46 = vld [vmem:[%s0 + $0x100] sm:$0xff]
  %v47 = vld [vmem:[%s0 + $0x108] sm:$0xff]
  %v48 = vld [vmem:[%s0 + $0x110] sm:$0xff]
  %v49 = vld [vmem:[%s0 + $0x118] sm:$0xff]
  %v50 = vld [vmem:[%s0 + $0x120] sm:$0xff]
  %v51 = vld [vmem:[%s0 + $0x128] sm:$0xff]
  %v52 = vld [vmem:[%s0 + $0x130] sm:$0xff]
  %v53 = vld [vmem:[%s0 + $0x138] sm:$0xff]
  %v54 = vld [vmem:[%s0 + $0x140] sm:$0xff]
  %v55 = vld [vmem:[%s0 + $0x148] sm:$0xff]
  %v56 = vld [vmem:[%s0 + $0x150] sm:$0xff]
  %v57 = vld [vmem:[%s0 + $0x158] sm:$0xff]
  %v58 = vld [vmem:[%s0 + $0x160] sm:$0xff]
  %v59 = vld [vmem:[%s0 + $0x168] sm:$0xff]
  %v60 = vld [vmem:[%s0 + $0x170] sm:$0xff]
  %v61 = vld [vmem:[%s0 + $0x178] sm:$0xff]
  %v62 = vld [vmem:[%s0 + $0x180] sm:$0xff]
  %v63 = vld [vmem:[%s0 + $0x188] sm:$0xff]
  %v64 = vld [vmem:[%s0 + $0x190] sm:$0xff]
  %v65 = vld [vmem:[%s0 + $0x198] sm:$0xff]
  %v66 = vld [vmem:[%s0 + $0x1a0] sm:$0xff]
  %v67 = vld [vmem:[%s0 + $0x1a8] sm:$0xff]
  %v68 = vld [vmem:[%s0 + $0x1b0] sm:$0xff]
  %v69 = vld [vmem:[%s0 + $0x1b8] sm:$0xff]
  %v70 = vld [vmem:[%s1] sm:$0xff]
  %v71 = vld [vmem:[%s1 + $0x8] sm:$0xff]
  %v72 = vld [vmem:[%s1 + $0x10] sm:$0xff]
  %v73 = vld [vmem:[%s1 + $0x18] sm:$0xff]
  %v74 = vld [vmem:[%s1 + $0x20] sm:$0xff]
  %v75 = vld [vmem:[%s1 + $0x28] sm:$0xff]
  %v76 = vld [vmem:[%s1 + $0x30] sm:$0xff]
  %v77 = vld [vmem:[%s1 + $0x38] sm:$0xff]
  %v78 = vld [vmem:[%s1 + $0x40] sm:$0xff]
  %v79 = vld [vmem:[%s1 + $0x48] sm:$0xff]
  %v80 = vld [vmem:[%s1 + $0x50] sm:$0xff]
  %v81 = vld [vmem:[%s1 + $0x58] sm:$0xff]
  %v82 = vld [vmem:[%s1 + $0x60] sm:$0xff]
  %v83 = vld [vmem:[%s1 + $0x68] sm:$0xff]
  %v84 = vld [vmem:[%s1 + $0x70] sm:$0xff]
  %v85 = vld [vmem:[%s1 + $0x78] sm:$0xff]
  %v86 = vld [vmem:[%s1 + $0x80] sm:$0xff]
  %v87 = vld [vmem:[%s1 + $0x88] sm:$0xff]
  %v88 = vld [vmem:[%s1 + $0x90] sm:$0xff]
  %v89 = vld [vmem:[%s1 + $0x98] sm:$0xff]
  %v90 = vld [vmem:[%s1 + $0xa0] sm:$0xff]
  %v91 = vld [vmem:[%s1 + $0xa8] sm:$0xff]
  %v92 = vld [vmem:[%s1 + $0xb0] sm:$0xff]
  %v93 = vld [vmem:[%s1 + $0xb8] sm:$0xff]
  %v94 = vld [vmem:[%s1 + $0xc0] sm:$0xff]
  %v95 = vld [vmem:[%s1 + $0xc8] sm:$0xff]
  %v96 = vld [vmem:[%s1 + $0xd0] sm:$0xff]
  %v97 = vld [vmem:[%s1 + $0xd8] sm:$0xff]
  %v98 = vld [vmem:[%s1 + $0xe0] sm:$0xff]
  %v99 = vld [vmem:[%s1 + $0xe8] sm:$0xff]
  %v100 = vld [vmem:[%s1 + $0xf0] sm:$0xff]
  %v101 = vld [vmem:[%s1 + $0xf8] sm:$0xff]
  %v102 = vld [vmem:[%s1 + $0x100] sm:$0xff]
  %v103 = vld [vmem:[%s1 + $0x108] sm:$0xff]
  %v104 = vld [vmem:[%s1 + $0x110] sm:$0xff]
  %v105 = vld [vmem:[%s1 + $0x118] sm:$0xff]
  %v106 = vld [vmem:[%s1 + $0x120] sm:$0xff]
  %v107 = vld [vmem:[%s1 + $0x128] sm:$0xff]
  %v108 = vld [vmem:[%s1 + $0x130] sm:$0xff]
  %v109 = vld [vmem:[%s1 + $0x138] sm:$0xff]
  %v110 = vld [vmem:[%s1 + $0x140] sm:$0xff]
  %v111 = vld [vmem:[%s1 + $0x148] sm:$0xff]
  %v112 = vld [vmem:[%s1 + $0x150] sm:$0xff]
  %v113 = vld [vmem:[%s1 + $0x158] sm:$0xff]
  %v114 = vld [vmem:[%s1 + $0x160] sm:$0xff]
  %v115 = vld [vmem:[%s1 + $0x168] sm:$0xff]
  %v116 = vld [vmem:[%s1 + $0x170] sm:$0xff]
  %v117 = vld [vmem:[%s1 + $0x178] sm:$0xff]
  %v118 = vld [vmem:[%s1 + $0x180] sm:$0xff]
  %v119 = vld [vmem:[%s1 + $0x188] sm:$0xff]
  %v120 = vld [vmem:[%s1 + $0x190] sm:$0xff]
  %v121 = vld [vmem:[%s1 + $0x198] sm:$0xff]
  %v122 = vld [vmem:[%s1 + $0x1a0] sm:$0xff]
  %v123 = vld [vmem:[%s1 + $0x1a8] sm:$0xff]
  %v124 = vld [vmem:[%s1 + $0x1b0] sm:$0xff]
  %v125 = vld [vmem:[%s1 + $0x1b8] sm:$0xff]
  %v126 = vld [vmem:[%s1 + $0x1c0] sm:$0xff]
  %v127 = vld [vmem:[%s1 + $0x1c8] sm:$0xff]
  %v128 = vld [vmem:[%s1 + $0x1d0] sm:$0xff]
  %v129 = vld [vmem:[%s1 + $0x1d8] sm:$0xff]
  %v130 = vld [vmem:[%s1 + $0x1e0] sm:$0xff]
  %v131 = vld [vmem:[%s1 + $0x1e8] sm:$0xff]
  %v132 = vld [vmem:[%s1 + $0x1f0] sm:$0xff]
  %v133 = vld [vmem:[%s1 + $0x1f8] sm:$0xff]
  %v134 = vld [vmem:[%s1 + $0x200] sm:$0xff]
  %v135 = vld [vmem:[%s1 + $0x208] sm:$0xff]
  %v136 = vld [vmem:[%s1 + $0x210] sm:$0xff]
  %v137 = vld [vmem:[%s1 + $0x218] sm:$0xff]
  %v138 = vld [vmem:[%s1 + $0x220] sm:$0xff]
  %v139 = vld [vmem:[%s1 + $0x228] sm:$0xff]
  %v140 = vld [vmem:[%s1 + $0x230] sm:$0xff]
  %v141 = vld [vmem:[%s1 + $0x238] sm:$0xff]
  %v142 = vld [vmem:[%s1 + $0x240] sm:$0xff]
  %v143 = vld [vmem:[%s1 + $0x248] sm:$0xff]
  %v144 = vld [vmem:[%s1 + $0x250] sm:$0xff]
  %v145 = vld [vmem:[%s1 + $0x258] sm:$0xff]
  %v146 = vld [vmem:[%s1 + $0x260] sm:$0xff]
  %v147 = vld [vmem:[%s1 + $0x268] sm:$0xff]
  %v148 = vld [vmem:[%s1 + $0x270] sm:$0xff]
  %v149 = vld [vmem:[%s1 + $0x278] sm:$0xff]
  %v150 = vld [vmem:[%s1 + $0x280] sm:$0xff]
  %v151 = vld [vmem:[%s1 + $0x288] sm:$0xff]
  %v152 = vld [vmem:[%s1 + $0x290] sm:$0xff]
  %v153 = vld [vmem:[%s1 + $0x298] sm:$0xff]
  %v154 = vld [vmem:[%s1 + $0x2a0] sm:$0xff]
  %v155 = vld [vmem:[%s1 + $0x2a8] sm:$0xff]
  %v156 = vld [vmem:[%s1 + $0x2b0] sm:$0xff]
  %v157 = vld [vmem:[%s1 + $0x2b8] sm:$0xff]
  %v158 = vld [vmem:[%s1 + $0x2c0] sm:$0xff]
  %v159 = vld [vmem:[%s1 + $0x2c8] sm:$0xff]
  %v160 = vld [vmem:[%s1 + $0x2d0] sm:$0xff]
  %v161 = vld [vmem:[%s1 + $0x2d8] sm:$0xff]
  %v162 = vld [vmem:[%s1 + $0x2e0] sm:$0xff]
  %v163 = vld [vmem:[%s1 + $0x2e8] sm:$0xff]
  %v164 = vld [vmem:[%s1 + $0x2f0] sm:$0xff]
  %v165 = vld [vmem:[%s1 + $0x2f8] sm:$0xff]
  %v166 = vld [vmem:[%s1 + $0x300] sm:$0xff]
  %v167 = vld [vmem:[%s1 + $0x308] sm:$0xff]
  %v168 = vld [vmem:[%s2] sm:$0x1]
  %v170 = vlaneseq
  %v171 = vshrl.u32 %v170, 7
  %v172 = vsub.s32 0, %v171
  %v173 = vrot.slane %v168, %v172
  %vm175 = vcmask 130048
  %v177 = vsel %vm175, %v20, 0
  %v180 = vsel %vm175, %v27, 0
  %v183 = vsel %vm175, %v34, 0
  %v186 = vsel %vm175, %v41, 0
  %v189 = vsel %vm175, %v48, 0
  %v192 = vsel %vm175, %v55, 0
  %v195 = vsel %vm175, %v62, 0
  %v198 = vsel %vm175, %v69, 0
  %200 = vmatprep.subr.mxu0 0.0
  %201 = vmatpush1.msra.mxu0 %v70
  %202 = vmatprep.subr.mxu0 0.0
  %203 = vmatpush1.msra.mxu0 %v71
  %204 = vmatprep.subr.mxu0 0.0
  %205 = vmatpush1.msra.mxu0 %v72
  %206 = vmatprep.subr.mxu0 0.0
  %207 = vmatpush1.msra.mxu0 %v73
  %208 = vmatprep.subr.mxu0 0.0
  %209 = vmatpush1.msra.mxu0 %v74
  %210 = vmatprep.subr.mxu0 0.0
  %211 = vmatpush1.msra.mxu0 %v75
  %212 = vmatprep.subr.mxu0 0.0
  %213 = vmatpush1.msra.mxu0 %v76
  %214 = vmatprep.subr.mxu0 0.0
  %215 = vmatpush1.msra.mxu0 %v77
  %216 = vmatprep.subr.mxu0 0.0
  %217 = vmatpush1.msra.mxu0 %v78
  %218 = vmatprep.subr.mxu0 0.0
  %219 = vmatpush1.msra.mxu0 %v79
  %220 = vmatprep.subr.mxu0 0.0
  %221 = vmatpush1.msra.mxu0 %v80
  %222 = vmatprep.subr.mxu0 0.0
  %223 = vmatpush1.msra.mxu0 %v81
  %224 = vmatprep.subr.mxu0 0.0
  %225 = vmatpush1.msra.mxu0 %v82
  %226 = vmatprep.subr.mxu0 0.0
  %227 = vmatpush1.msra.mxu0 %v83
  %228 = vmatprep.subr.mxu0 0.0
  %229 = vmatpush1.msra.mxu0 %v84
  %230 = vmatprep.subr.mxu0 0.0
  %231 = vmatpush1.msra.mxu0 %v85
  %232 = vmatprep.subr.mxu0 0.0
  %233 = vmatpush1.msra.mxu0 %v86
  %234 = vmatprep.subr.mxu0 0.0
  %235 = vmatpush1.msra.mxu0 %v87
  %236 = vmatprep.subr.mxu0 0.0
  %237 = vmatpush1.msra.mxu0 %v88
  %238 = vmatprep.subr.mxu0 0.0
  %239 = vmatpush1.msra.mxu0 %v89
  %240 = vmatprep.subr.mxu0 0.0
  %241 = vmatpush1.msra.mxu0 %v90
  %242 = vmatprep.subr.mxu0 0.0
  %243 = vmatpush1.msra.mxu0 %v91
  %244 = vmatprep.subr.mxu0 0.0
  %245 = vmatpush1.msra.mxu0 %v92
  %246 = vmatprep.subr.mxu0 0.0
  %247 = vmatpush1.msra.mxu0 %v93
  %248 = vmatprep.subr.mxu0 0.0
  %249 = vmatpush1.msra.mxu0 %v94
  %250 = vmatprep.subr.mxu0 0.0
  %251 = vmatpush1.msra.mxu0 %v95
  %252 = vmatprep.subr.mxu0 0.0
  %253 = vmatpush1.msra.mxu0 %v96
  %254 = vmatprep.subr.mxu0 0.0
  %255 = vmatpush1.msra.mxu0 %v97
  %256 = vmatprep.subr.mxu0 0.0
  %257 = vmatpush1.msra.mxu0 %v98
  %258 = vmatprep.subr.mxu0 0.0
  %259 = vmatpush1.msra.mxu0 %v99
  %260 = vmatprep.subr.mxu0 0.0
  %261 = vmatpush1.msra.mxu0 %v100
  %262 = vmatprep.subr.mxu0 0.0
  %263 = vmatpush1.msra.mxu0 %v101
  %264 = vmatprep.mubr.f32.mxu0 %v15
  %265 = vmatmul.mubr.f32.gmra.mrb[0].mxu0 %v14
  %v266 = vpop.f32.mrb[0].mxu0
  %v267 = vadd.f32 %v173, %v266
  %v268 = vpop.f32.mrb[0].mxu0
  %269 = vmatprep.mubr.f32.mxu0 %v22
  %270 = vmatmul.mubr.f32.gmra.mrb[0].mxu0 %v21
  %v271 = vpop.f32.mrb[0].mxu0
  %v272 = vadd.f32 %v173, %v271
  %v273 = vpop.f32.mrb[0].mxu0
  %274 = vmatprep.mubr.f32.mxu0 %v29
  %275 = vmatmul.mubr.f32.gmra.mrb[0].mxu0 %v28
  %v276 = vpop.f32.mrb[0].mxu0
  %v277 = vadd.f32 %v173, %v276
  %v278 = vpop.f32.mrb[0].mxu0
  %279 = vmatprep.mubr.f32.mxu0 %v36
  %280 = vmatmul.mubr.f32.gmra.mrb[0].mxu0 %v35
  %v281 = vpop.f32.mrb[0].mxu0
  %v282 = vadd.f32 %v173, %v281
  %v283 = vpop.f32.mrb[0].mxu0
  %284 = vmatprep.mubr.f32.mxu0 %v43
  %285 = vmatmul.mubr.f32.gmra.mrb[0].mxu0 %v42
  %v286 = vpop.f32.mrb[0].mxu0
  %v287 = vadd.f32 %v173, %v286
  %v288 = vpop.f32.mrb[0].mxu0
  %289 = vmatprep.mubr.f32.mxu0 %v50
  %290 = vmatmul.mubr.f32.gmra.mrb[0].mxu0 %v49
  %v291 = vpop.f32.mrb[0].mxu0
  %v292 = vadd.f32 %v173, %v291
  %v293 = vpop.f32.mrb[0].mxu0
  %294 = vmatprep.mubr.f32.mxu0 %v57
  %295 = vmatmul.mubr.f32.gmra.mrb[0].mxu0 %v56
  %v296 = vpop.f32.mrb[0].mxu0
  %v297 = vadd.f32 %v173, %v296
  %v298 = vpop.f32.mrb[0].mxu0
  %299 = vmatprep.mubr.f32.mxu0 %v64
  %300 = vmatmul.mubr.f32.gmra.mrb[0].mxu0 %v63
  %v301 = vpop.f32.mrb[0].mxu0
  %v302 = vadd.f32 %v173, %v301
  %v303 = vpop.f32.mrb[0].mxu0
  %304 = vdwg.mxu0
  %305 = vmatprep.subr.mxu0 0.0
  %306 = vmatpush1.msra.mxu0 %v102
  %307 = vmatprep.subr.mxu0 0.0
  %308 = vmatpush1.msra.mxu0 %v103
  %309 = vmatprep.subr.mxu0 0.0
  %310 = vmatpush1.msra.mxu0 %v104
  %311 = vmatprep.subr.mxu0 0.0
  %312 = vmatpush1.msra.mxu0 %v105
  %313 = vmatprep.subr.mxu0 0.0
  %314 = vmatpush1.msra.mxu0 %v106
  %315 = vmatprep.subr.mxu0 0.0
  %316 = vmatpush1.msra.mxu0 %v107
  %317 = vmatprep.subr.mxu0 0.0
  %318 = vmatpush1.msra.mxu0 %v108
  %319 = vmatprep.subr.mxu0 0.0
  %320 = vmatpush1.msra.mxu0 %v109
  %321 = vmatprep.subr.mxu0 0.0
  %322 = vmatpush1.msra.mxu0 %v110
  %323 = vmatprep.subr.mxu0 0.0
  %324 = vmatpush1.msra.mxu0 %v111
  %325 = vmatprep.subr.mxu0 0.0
  %326 = vmatpush1.msra.mxu0 %v112
  %327 = vmatprep.subr.mxu0 0.0
  %328 = vmatpush1.msra.mxu0 %v113
  %329 = vmatprep.subr.mxu0 0.0
  %330 = vmatpush1.msra.mxu0 %v114
  %331 = vmatprep.subr.mxu0 0.0
  %332 = vmatpush1.msra.mxu0 %v115
  %333 = vmatprep.subr.mxu0 0.0
  %334 = vmatpush1.msra.mxu0 %v116
  %335 = vmatprep.subr.mxu0 0.0
  %336 = vmatpush1.msra.mxu0 %v117
  %337 = vmatprep.subr.mxu0 0.0
  %338 = vmatpush1.msra.mxu0 %v118
  %339 = vmatprep.subr.mxu0 0.0
  %340 = vmatpush1.msra.mxu0 %v119
  %341 = vmatprep.subr.mxu0 0.0
  %342 = vmatpush1.msra.mxu0 %v120
  %343 = vmatprep.subr.mxu0 0.0
  %344 = vmatpush1.msra.mxu0 %v121
  %345 = vmatprep.subr.mxu0 0.0
  %346 = vmatpush1.msra.mxu0 %v122
  %347 = vmatprep.subr.mxu0 0.0
  %348 = vmatpush1.msra.mxu0 %v123
  %349 = vmatprep.subr.mxu0 0.0
  %350 = vmatpush1.msra.mxu0 %v124
  %351 = vmatprep.subr.mxu0 0.0
  %352 = vmatpush1.msra.mxu0 %v125
  %353 = vmatprep.subr.mxu0 0.0
  %354 = vmatpush1.msra.mxu0 %v126
  %355 = vmatprep.subr.mxu0 0.0
  %356 = vmatpush1.msra.mxu0 %v127
  %357 = vmatprep.subr.mxu0 0.0
  %358 = vmatpush1.msra.mxu0 %v128
  %359 = vmatprep.subr.mxu0 0.0
  %360 = vmatpush1.msra.mxu0 %v129
  %361 = vmatprep.subr.mxu0 0.0
  %362 = vmatpush1.msra.mxu0 %v130
  %363 = vmatprep.subr.mxu0 0.0
  %364 = vmatpush1.msra.mxu0 %v131
  %365 = vmatprep.subr.mxu0 0.0
  %366 = vmatpush1.msra.mxu0 %v132
  %367 = vmatprep.subr.mxu0 0.0
  %368 = vmatpush1.msra.mxu0 %v133
  %369 = vmatprep.mubr.f32.mxu0 %v17
  %370 = vmatmul.mubr.f32.gmra.mrb[0].mxu0 %v16
  %v371 = vpop.f32.mrb[0].mxu0
  %v372 = vadd.f32 %v267, %v371
  %v373 = vpop.f32.mrb[0].mxu0
  %374 = vmatprep.mubr.f32.mxu0 %v24
  %375 = vmatmul.mubr.f32.gmra.mrb[0].mxu0 %v23
  %v376 = vpop.f32.mrb[0].mxu0
  %v377 = vadd.f32 %v272, %v376
  %v378 = vpop.f32.mrb[0].mxu0
  %379 = vmatprep.mubr.f32.mxu0 %v31
  %380 = vmatmul.mubr.f32.gmra.mrb[0].mxu0 %v30
  %v381 = vpop.f32.mrb[0].mxu0
  %v382 = vadd.f32 %v277, %v381
  %v383 = vpop.f32.mrb[0].mxu0
  %384 = vmatprep.mubr.f32.mxu0 %v38
  %385 = vmatmul.mubr.f32.gmra.mrb[0].mxu0 %v37
  %v386 = vpop.f32.mrb[0].mxu0
  %v387 = vadd.f32 %v282, %v386
  %v388 = vpop.f32.mrb[0].mxu0
  %389 = vmatprep.mubr.f32.mxu0 %v45
  %390 = vmatmul.mubr.f32.gmra.mrb[0].mxu0 %v44
  %v391 = vpop.f32.mrb[0].mxu0
  %v392 = vadd.f32 %v287, %v391
  %v393 = vpop.f32.mrb[0].mxu0
  %394 = vmatprep.mubr.f32.mxu0 %v52
  %395 = vmatmul.mubr.f32.gmra.mrb[0].mxu0 %v51
  %v396 = vpop.f32.mrb[0].mxu0
  %v397 = vadd.f32 %v292, %v396
  %v398 = vpop.f32.mrb[0].mxu0
  %399 = vmatprep.mubr.f32.mxu0 %v59
  %400 = vmatmul.mubr.f32.gmra.mrb[0].mxu0 %v58
  %v401 = vpop.f32.mrb[0].mxu0
  %v402 = vadd.f32 %v297, %v401
  %v403 = vpop.f32.mrb[0].mxu0
  %404 = vmatprep.mubr.f32.mxu0 %v66
  %405 = vmatmul.mubr.f32.gmra.mrb[0].mxu0 %v65
  %v406 = vpop.f32.mrb[0].mxu0
  %v407 = vadd.f32 %v302, %v406
  %v408 = vpop.f32.mrb[0].mxu0
  %409 = vdwg.mxu0
  %410 = vmatprep.subr.mxu0 0.0
  %411 = vmatpush1.msra.mxu0 %v134
  %412 = vmatprep.subr.mxu0 0.0
  %413 = vmatpush1.msra.mxu0 %v135
  %414 = vmatprep.subr.mxu0 0.0
  %415 = vmatpush1.msra.mxu0 %v136
  %416 = vmatprep.subr.mxu0 0.0
  %417 = vmatpush1.msra.mxu0 %v137
  %418 = vmatprep.subr.mxu0 0.0
  %419 = vmatpush1.msra.mxu0 %v138
  %420 = vmatprep.subr.mxu0 0.0
  %421 = vmatpush1.msra.mxu0 %v139
  %422 = vmatprep.subr.mxu0 0.0
  %423 = vmatpush1.msra.mxu0 %v140
  %424 = vmatprep.subr.mxu0 0.0
  %425 = vmatpush1.msra.mxu0 %v141
  %426 = vmatprep.subr.mxu0 0.0
  %427 = vmatpush1.msra.mxu0 %v142
  %428 = vmatprep.subr.mxu0 0.0
  %429 = vmatpush1.msra.mxu0 %v143
  %430 = vmatprep.subr.mxu0 0.0
  %431 = vmatpush1.msra.mxu0 %v144
  %432 = vmatprep.subr.mxu0 0.0
  %433 = vmatpush1.msra.mxu0 %v145
  %434 = vmatprep.subr.mxu0 0.0
  %435 = vmatpush1.msra.mxu0 %v146
  %436 = vmatprep.subr.mxu0 0.0
  %437 = vmatpush1.msra.mxu0 %v147
  %438 = vmatprep.subr.mxu0 0.0
  %439 = vmatpush1.msra.mxu0 %v148
  %440 = vmatprep.subr.mxu0 0.0
  %441 = vmatpush1.msra.mxu0 %v149
  %442 = vmatprep.subr.mxu0 0.0
  %443 = vmatpush1.msra.mxu0 %v150
  %444 = vmatprep.subr.mxu0 0.0
  %445 = vmatpush1.msra.mxu0 %v151
  %446 = vmatprep.subr.mxu0 0.0
  %447 = vmatpush1.msra.mxu0 %v152
  %448 = vmatprep.subr.mxu0 0.0
  %449 = vmatpush1.msra.mxu0 %v153
  %450 = vmatprep.subr.mxu0 0.0
  %451 = vmatpush1.msra.mxu0 %v154
  %452 = vmatprep.subr.mxu0 0.0
  %453 = vmatpush1.msra.mxu0 %v155
  %454 = vmatprep.subr.mxu0 0.0
  %455 = vmatpush1.msra.mxu0 %v156
  %456 = vmatprep.subr.mxu0 0.0
  %457 = vmatpush1.msra.mxu0 %v157
  %458 = vmatprep.subr.mxu0 0.0
  %459 = vmatpush1.msra.mxu0 %v158
  %460 = vmatprep.subr.mxu0 0.0
  %461 = vmatpush1.msra.mxu0 %v159
  %462 = vmatprep.subr.mxu0 0.0
  %463 = vmatpush1.msra.mxu0 %v160
  %464 = vmatprep.subr.mxu0 0.0
  %465 = vmatpush1.msra.mxu0 %v161
  %466 = vmatprep.subr.mxu0 0.0
  %467 = vmatpush1.msra.mxu0 %v162
  %468 = vmatprep.subr.mxu0 0.0
  %469 = vmatpush1.msra.mxu0 %v163
  %470 = vmatprep.subr.mxu0 0.0
  %471 = vmatpush1.msra.mxu0 %v164
  %472 = vmatprep.subr.mxu0 0.0
  %473 = vmatpush1.msra.mxu0 %v165
  %474 = vmatprep.mubr.f32.mxu0 %v19
  %475 = vmatmul.mubr.f32.gmra.mrb[0].mxu0 %v18
  %v476 = vpop.f32.mrb[0].mxu0
  %v477 = vadd.f32 %v372, %v476
  %v478 = vpop.f32.mrb[0].mxu0
  %479 = vmatprep.mubr.f32.mxu0 %v26
  %480 = vmatmul.mubr.f32.gmra.mrb[0].mxu0 %v25
  %v481 = vpop.f32.mrb[0].mxu0
  %v482 = vadd.f32 %v377, %v481
  %v483 = vpop.f32.mrb[0].mxu0
  %484 = vmatprep.mubr.f32.mxu0 %v33
  %485 = vmatmul.mubr.f32.gmra.mrb[0].mxu0 %v32
  %v486 = vpop.f32.mrb[0].mxu0
  %v487 = vadd.f32 %v382, %v486
  %v488 = vpop.f32.mrb[0].mxu0
  %489 = vmatprep.mubr.f32.mxu0 %v40
  %490 = vmatmul.mubr.f32.gmra.mrb[0].mxu0 %v39
  %v491 = vpop.f32.mrb[0].mxu0
  %v492 = vadd.f32 %v387, %v491
  %v493 = vpop.f32.mrb[0].mxu0
  %494 = vmatprep.mubr.f32.mxu0 %v47
  %495 = vmatmul.mubr.f32.gmra.mrb[0].mxu0 %v46
  %v496 = vpop.f32.mrb[0].mxu0
  %v497 = vadd.f32 %v392, %v496
  %v498 = vpop.f32.mrb[0].mxu0
  %499 = vmatprep.mubr.f32.mxu0 %v54
  %500 = vmatmul.mubr.f32.gmra.mrb[0].mxu0 %v53
  %v501 = vpop.f32.mrb[0].mxu0
  %v502 = vadd.f32 %v397, %v501
  %v503 = vpop.f32.mrb[0].mxu0
  %504 = vmatprep.mubr.f32.mxu0 %v61
  %505 = vmatmul.mubr.f32.gmra.mrb[0].mxu0 %v60
  %v506 = vpop.f32.mrb[0].mxu0
  %v507 = vadd.f32 %v402, %v506
  %v508 = vpop.f32.mrb[0].mxu0
  %509 = vmatprep.mubr.f32.mxu0 %v68
  %510 = vmatmul.mubr.f32.gmra.mrb[0].mxu0 %v67
  %v511 = vpop.f32.mrb[0].mxu0
  %v512 = vadd.f32 %v407, %v511
  %v513 = vpop.f32.mrb[0].mxu0
  %514 = vdwg.mxu0
  %515 = vmatprep.subr.mxu0 0.0
  %516 = vmatpush1.msra.mxu0 %v166
  %517 = vmatprep.subr.mxu0 0.0
  %518 = vmatpush1.msra.mxu0 %v167
  %519 = vmatprep.subr.mxu0 0.0
  %520 = vmatpush1.msra.mxu0 0.0
  %521 = vmatprep.subr.mxu0 0.0
  %522 = vmatpush1.msra.mxu0 0.0
  %523 = vmatprep.subr.mxu0 0.0
  %524 = vmatpush1.msra.mxu0 0.0
  %525 = vmatprep.subr.mxu0 0.0
  %526 = vmatpush1.msra.mxu0 0.0
  %527 = vmatprep.subr.mxu0 0.0
  %528 = vmatpush1.msra.mxu0 0.0
  %529 = vmatprep.subr.mxu0 0.0
  %530 = vmatpush1.msra.mxu0 0.0
  %531 = vmatprep.subr.mxu0 0.0
  %532 = vmatpush1.msra.mxu0 0.0
  %533 = vmatprep.subr.mxu0 0.0
  %534 = vmatpush1.msra.mxu0 0.0
  %535 = vmatprep.subr.mxu0 0.0
  %536 = vmatpush1.msra.mxu0 0.0
  %537 = vmatprep.subr.mxu0 0.0
  %538 = vmatpush1.msra.mxu0 0.0
  %539 = vmatprep.subr.mxu0 0.0
  %540 = vmatpush1.msra.mxu0 0.0
  %541 = vmatprep.subr.mxu0 0.0
  %542 = vmatpush1.msra.mxu0 0.0
  %543 = vmatprep.subr.mxu0 0.0
  %544 = vmatpush1.msra.mxu0 0.0
  %545 = vmatprep.subr.mxu0 0.0
  %546 = vmatpush1.msra.mxu0 0.0
  %547 = vmatprep.subr.mxu0 0.0
  %548 = vmatpush1.msra.mxu0 0.0
  %549 = vmatprep.subr.mxu0 0.0
  %550 = vmatpush1.msra.mxu0 0.0
  %551 = vmatprep.subr.mxu0 0.0
  %552 = vmatpush1.msra.mxu0 0.0
  %553 = vmatprep.subr.mxu0 0.0
  %554 = vmatpush1.msra.mxu0 0.0
  %555 = vmatprep.subr.mxu0 0.0
  %556 = vmatpush1.msra.mxu0 0.0
  %557 = vmatprep.subr.mxu0 0.0
  %558 = vmatpush1.msra.mxu0 0.0
  %559 = vmatprep.subr.mxu0 0.0
  %560 = vmatpush1.msra.mxu0 0.0
  %561 = vmatprep.subr.mxu0 0.0
  %562 = vmatpush1.msra.mxu0 0.0
  %563 = vmatprep.subr.mxu0 0.0
  %564 = vmatpush1.msra.mxu0 0.0
  %565 = vmatprep.subr.mxu0 0.0
  %566 = vmatpush1.msra.mxu0 0.0
  %567 = vmatprep.subr.mxu0 0.0
  %568 = vmatpush1.msra.mxu0 0.0
  %569 = vmatprep.subr.mxu0 0.0
  %570 = vmatpush1.msra.mxu0 0.0
  %571 = vmatprep.subr.mxu0 0.0
  %572 = vmatpush1.msra.mxu0 0.0
  %573 = vmatprep.subr.mxu0 0.0
  %574 = vmatpush1.msra.mxu0 0.0
  %575 = vmatprep.subr.mxu0 0.0
  %576 = vmatpush1.msra.mxu0 0.0
  %577 = vmatprep.subr.mxu0 0.0
  %578 = vmatpush1.msra.mxu0 0.0
  %579 = vmatprep.mubr.f32.mxu0 0.0
  %580 = vmatmul.mubr.f32.gmra.mrb[0].mxu0 %v177
  %v581 = vpop.f32.mrb[0].mxu0
  %v582 = vadd.f32 %v477, %v581
  %v583 = vpop.f32.mrb[0].mxu0
  %584 = vmatprep.mubr.f32.mxu0 0.0
  %585 = vmatmul.mubr.f32.gmra.mrb[0].mxu0 %v180
  %v586 = vpop.f32.mrb[0].mxu0
  %v587 = vadd.f32 %v482, %v586
  %v588 = vpop.f32.mrb[0].mxu0
  %589 = vmatprep.mubr.f32.mxu0 0.0
  %590 = vmatmul.mubr.f32.gmra.mrb[0].mxu0 %v183
  %v591 = vpop.f32.mrb[0].mxu0
  %v592 = vadd.f32 %v487, %v591
  %v593 = vpop.f32.mrb[0].mxu0
  %594 = vmatprep.mubr.f32.mxu0 0.0
  %595 = vmatmul.mubr.f32.gmra.mrb[0].mxu0 %v186
  %v596 = vpop.f32.mrb[0].mxu0
  %v597 = vadd.f32 %v492, %v596
  %v598 = vpop.f32.mrb[0].mxu0
  %599 = vmatprep.mubr.f32.mxu0 0.0
  %600 = vmatmul.mubr.f32.gmra.mrb[0].mxu0 %v189
  %v601 = vpop.f32.mrb[0].mxu0
  %v602 = vadd.f32 %v497, %v601
  %v603 = vpop.f32.mrb[0].mxu0
  %604 = vmatprep.mubr.f32.mxu0 0.0
  %605 = vmatmul.mubr.f32.gmra.mrb[0].mxu0 %v192
  %v606 = vpop.f32.mrb[0].mxu0
  %v607 = vadd.f32 %v502, %v606
  %v608 = vpop.f32.mrb[0].mxu0
  %609 = vmatprep.mubr.f32.mxu0 0.0
  %610 = vmatmul.mubr.f32.gmra.mrb[0].mxu0 %v195
  %v611 = vpop.f32.mrb[0].mxu0
  %v612 = vadd.f32 %v507, %v611
  %v613 = vpop.f32.mrb[0].mxu0
  %614 = vmatprep.mubr.f32.mxu0 0.0
  %615 = vmatmul.mubr.f32.gmra.mrb[0].mxu0 %v198
  %v616 = vpop.f32.mrb[0].mxu0
  %v617 = vadd.f32 %v512, %v616
  %v618 = vpop.f32.mrb[0].mxu0
  %619 = vdwg.mxu0
  %vm620 = vcmask 80896
  %621 = vst.msk [vmem:[%s3] sm:$0xff] %vm620, %v582
  %622 = vst.msk [vmem:[%s3 + $0x8] sm:$0xff] %vm620, %v587
  %623 = vst.msk [vmem:[%s3 + $0x10] sm:$0xff] %vm620, %v592
  %624 = vst.msk [vmem:[%s3 + $0x18] sm:$0xff] %vm620, %v597
  %625 = vst.msk [vmem:[%s3 + $0x20] sm:$0xff] %vm620, %v602
  %626 = vst.msk [vmem:[%s3 + $0x28] sm:$0xff] %vm620, %v607
  %627 = vst.msk [vmem:[%s3 + $0x30] sm:$0xff] %vm620, %v612
  %628 = vst.msk [vmem:[%s3 + $0x38] sm:$0xff] %vm620, %v617
  // Predicated region
  $region14: #{tpu_custom_call.1} parent=0 // pred_check
    _
  $region15: #{tpu_custom_call.1} parent=0 // pred_check_branch
    %630 = sbr.rel (0) target = $region17
  $region16: #{tpu_custom_call.1} parent=0 // pred_region
    _
  $region17: #{tpu_custom_call.1} parent=0 // pred_fallthru
    _
  // Predicated region
  $region18: #{tpu_custom_call.1} parent=0 // pred_check
    _
  $region19: #{tpu_custom_call.1} parent=0 // pred_check_branch
    %632 = sbr.rel (0) target = $region21
  $region20: #{tpu_custom_call.1} parent=0 // pred_region
    _
  $region21: #{tpu_custom_call.1} parent=0 // pred_fallthru
    _

</llo_original>
